<compile_context>
chip_gen: v7x
topology: tpu7x:2x2x1
jax: 0.10.0
libtpu: 0.0.40
codegen_flags: <defaults>
</compile_context>

<pallas_src>
import jax
import jax.numpy as jnp
from jax.experimental import pallas as pl
from jax.experimental.pallas import tpu as pltpu

_GROUP = 16        # rows fused per MXU "super-row": K = 16*3 = 48, N = 16*8 = 128
_TBR_CAP = 4096    # max row-groups per tile (= 65536 rows; ~8 MiB VMEM double-buffered)


def _fused_linear_mean_kernel(x_ref, w_ref, b_ref, o_ref):
    # x_ref: (TBR, 48)   row-group tile of the input (natural layout, contiguous DMA)
    # w_ref: (48, 128)   block-diag folded weight kron(I16, (W + 1/IN)^T); VMEM-resident
    # b_ref: (1, 128)    tiled bias; VMEM-resident
    # o_ref: (TBR, 128)  lane-dense output tile (natural (B, 8) layout after reshape)
    acc = jnp.dot(
        x_ref[...], w_ref[...],
        preferred_element_type=jnp.float32,
        precision=jax.lax.Precision.HIGHEST,
    )
    o_ref[...] = (acc + b_ref[...]).astype(o_ref.dtype)


@jax.jit
def model_forward(x, w, b):
    """x: (B, IN) f32, w: (OUT, IN) nn.Linear weight, b: (OUT,) bias -> (B, OUT) f32."""
    B, IN = x.shape
    OUT = w.shape[0]
    x = x.astype(jnp.float32)

    # Fold the row-mean into the weights: x @ W^T + b + mean(x,1) == x @ (W + 1/IN)^T + b
    wt_fold = (w.astype(jnp.float32) + 1.0 / IN).T                     # (IN, OUT)

    # Fuse GROUP rows so the tiny per-row map becomes a proper MXU matmul while both the
    # input and output keep their contiguous (B, *) layouts (reshapes below are free).
    g = _GROUP
    K, N = g * IN, g * OUT                                             # 48, 128
    w_big = jnp.kron(jnp.eye(g, dtype=jnp.float32), wt_fold)           # (K, N) block-diag
    b_big = jnp.tile(b.astype(jnp.float32), g).reshape(1, N)           # (1, N)

    Bp = pl.cdiv(B, g) * g
    if Bp != B:                        # at most g-1 = 15 rows of padding (usually skipped)
        x = jnp.pad(x, ((0, Bp - B), (0, 0)))
    Bg = Bp // g

    x_g = x.reshape(Bg, K)             # free reshape (row-major contiguous)

    # Tile the row-group axis: >= 2 steps whenever possible (v7x dual-TensorCore via
    # dimension_semantics), capped so double-buffered tiles stay small in VMEM.
    if Bg <= 8:
        tbr = Bg                       # block == full array extent (ragged-dim exception)
    else:
        tbr = min(_TBR_CAP, max(8, pl.cdiv(pl.cdiv(Bg, 2), 8) * 8))
    grid = (pl.cdiv(Bg, tbr),)         # ragged last block handled by Pallas masking

    y_g = pl.pallas_call(
        _fused_linear_mean_kernel,
        out_shape=jax.ShapeDtypeStruct((Bg, N), jnp.float32),
        grid=grid,
        in_specs=[
            pl.BlockSpec((tbr, K), lambda i: (i, 0)),     # x tile, auto double-buffered
            pl.BlockSpec((K, N), lambda i: (0, 0)),       # weight, stays VMEM-resident
            pl.BlockSpec((1, N), lambda i: (0, 0)),       # bias, stays VMEM-resident
        ],
        out_specs=pl.BlockSpec((tbr, N), lambda i: (i, 0)),  # lane-dense output tile
        compiler_params=pltpu.CompilerParams(
            dimension_semantics=("parallel",),            # shard row tiles across TCs (v7x)
        ),
    )(x_g, w_big, b_big)

    y = y_g.reshape(Bp, OUT)           # free reshape back to (B, OUT)
    return y if Bp == B else y[:B]


if __name__ == "__main__":
    key = jax.random.PRNGKey(0)
    kx, kw, kb = jax.random.split(key, 3)

    B, IN, OUT = 592, 3, 8             # B % 16 == 0 (no pad); grid gets 2 parallel steps

    # Deterministic synthetic parameters (same shapes as nn.Linear(3, 8, bias=True)).
    bound = 1.0 / (IN ** 0.5)
    w = jax.random.uniform(kw, (OUT, IN), jnp.float32, minval=-bound, maxval=bound)
    b = jax.random.uniform(kb, (OUT,), jnp.float32, minval=-bound, maxval=bound)
    x = jax.random.normal(kx, (B, IN), jnp.float32)

    out = jax.block_until_ready(model_forward(x, w, b))

    # Plain-JAX reference of the original forward.
    ref = x @ w.T + b + jnp.mean(x, axis=1, keepdims=True)
    assert out.shape == (B, OUT)
    assert jnp.allclose(out, ref, atol=1e-5, rtol=1e-5)

    print("KERNEL_OK")
</pallas_src>

<mosaic_0001>
module attributes {stable_mosaic.version = 11 : i64} {
  func.func @_fused_linear_mean_kernel(%arg0: i32, %arg1: memref<24x48xf32, #tpu.memory_space<vmem>>, %arg2: memref<48x128xf32, #tpu.memory_space<vmem>>, %arg3: memref<1x128xf32, #tpu.memory_space<vmem>>, %arg4: memref<24x128xf32, #tpu.memory_space<vmem>>) attributes {dimension_semantics = [#tpu.dimension_semantics<parallel>], iteration_bounds = array<i64: 2>, scalar_prefetch = 0 : i64, scratch_operands = 0 : i64, tpu.core_type = #tpu.core_type<tc>, window_params = [{transform_indices = @transform_0, window_bounds = array<i64: 24, 48>}, {pipeline_mode = #tpu.pipeline_mode<synchronous>, transform_indices = @transform_1, window_bounds = array<i64: 48, 128>}, {pipeline_mode = #tpu.pipeline_mode<synchronous>, transform_indices = @transform_2, window_bounds = array<i64: 1, 128>}, {transform_indices = @transform_3, window_bounds = array<i64: 24, 128>}]} {
    %c0 = arith.constant 0 : index
    %c0_0 = arith.constant 0 : index
    %0 = vector.load %arg1[%c0, %c0_0] : memref<24x48xf32, #tpu.memory_space<vmem>>, vector<24x48xf32>
    %c0_1 = arith.constant 0 : index
    %c0_2 = arith.constant 0 : index
    %1 = vector.load %arg2[%c0_1, %c0_2] : memref<48x128xf32, #tpu.memory_space<vmem>>, vector<48x128xf32>
    %cst = arith.constant dense<0.000000e+00> : vector<24x128xf32>
    %2 = tpu.matmul %0, %1, %cst {dimension_numbers = #tpu.dot_dimension_numbers<[1], [0], [0], [1], [0, 0, 1, 1], [], []>, precision = #tpu.contract_precision<fp32>} : vector<24x48xf32>, vector<48x128xf32>, vector<24x128xf32> -> vector<24x128xf32>
    %c0_3 = arith.constant 0 : index
    %c0_4 = arith.constant 0 : index
    %3 = vector.load %arg3[%c0_3, %c0_4] : memref<1x128xf32, #tpu.memory_space<vmem>>, vector<1x128xf32>
    %4 = vector.broadcast %3 : vector<1x128xf32> to vector<24x128xf32>
    %5 = arith.addf %2, %4 : vector<24x128xf32>
    %c0_5 = arith.constant 0 : index
    %c0_6 = arith.constant 0 : index
    %6 = vector.load %arg4[%c0_5, %c0_6] : memref<24x128xf32, #tpu.memory_space<vmem>>, vector<24x128xf32>
    tpu.vector_store %arg4[%c0_5, %c0_6], %5 {strides = array<i32>} : memref<24x128xf32, #tpu.memory_space<vmem>>, vector<24x128xf32>,
    return
  }
  func.func @transform_0(%arg0: i32) -> (i32, i32) {
    %c0_i32 = arith.constant 0 : i32
    %c0_i32_0 = arith.constant 0 : i32
    return %arg0, %c0_i32 : i32, i32
  }
  func.func @transform_1(%arg0: i32) -> (i32, i32) {
    %c0_i32 = arith.constant 0 : i32
    %c0_i32_0 = arith.constant 0 : i32
    %c0_i32_1 = arith.constant 0 : i32
    return %c0_i32, %c0_i32_0 : i32, i32
  }
  func.func @transform_2(%arg0: i32) -> (i32, i32) {
    %c0_i32 = arith.constant 0 : i32
    %c0_i32_0 = arith.constant 0 : i32
    %c0_i32_1 = arith.constant 0 : i32
    return %c0_i32, %c0_i32_0 : i32, i32
  }
  func.func @transform_3(%arg0: i32) -> (i32, i32) {
    %c0_i32 = arith.constant 0 : i32
    %c0_i32_0 = arith.constant 0 : i32
    return %arg0, %c0_i32 : i32, i32
  }
}

</mosaic_0001>

<llo_original>
// kernel: tile.8
$region0: #{tile.8}
  #allocation0 [shape = 's32[1]{0}', space=sflag, size = 0x4, scoped, tag = 'scoped memory for tile.8']
  %s0 = inlined_call_operand.vmem [shape: f32[8], index: 0, kind: input, shape index: {}]
  %s1 = inlined_call_operand.vmem [shape: f32[16,8], index: 1, kind: output, shape index: {}]
  // Predicated region
  $region2: #{tile.8} parent=0 // pred_check
    _
  $region3: #{tile.8} parent=0 // pred_check_branch
    %3 = sbr.rel (0) target = $region5
  $region4: #{tile.8} parent=0 // pred_region
    _
  $region5: #{tile.8} parent=0 // pred_fallthru
    _
  %v4 = vld [vmem:[%s0] ss:$0 sm:$0xff]
  %5 = vst [vmem:[%s1] sm:$0xff] %v4
  %s6 = scalar_lea.vmem %s1, 8
  %7 = vst [vmem:[%s6] sm:$0xff] %v4

// kernel: tile.9
$region0: #{tile.9}
  %s0 = inlined_call_operand.vmem [shape: f32[16,8], index: 0, kind: input, shape index: {}]
  %s1 = inlined_call_operand.vmem [shape: f32[1,128], index: 1, kind: output, shape index: {}]
  $region1: #{tile.9} parent=0
    #allocation0 [shape = 'u8[4096]{0}', space=vmem, size = 0x1000, scoped, tag = 'scoped mem for output reshape']
    %v2 = vld [vmem:[%s0] sm:$0x1]
    %vm3 = vcmask 64512
    %4 = vst.msk [vmem:[#allocation0] sm:$0x1] %vm3, %v2
    %s5 = scalar_lea.vmem %s0, 15
    %v6 = vld [vmem:[%s5] sm:$0x1]
    %7 = vrot.lane.b32.xlu0 %v6, 120
    %v8 = vpop.permute.xlu0 %7
    %vm9 = vcmask 1048512
    %10 = vst.msk [vmem:[#allocation0] sm:$0x1] %vm9, %v8
    %s11 = scalar_lea.vmem %s0, 14
    %v12 = vld [vmem:[%s11] sm:$0x1]
    %13 = vrot.lane.b32.xlu0 %v12, 112
    %v14 = vpop.permute.xlu0 %13
    %vm15 = vcmask 982912
    %16 = vst.msk [vmem:[#allocation0] sm:$0x1] %vm15, %v14
    %s17 = scalar_lea.vmem %s0, 13
    %v18 = vld [vmem:[%s17] sm:$0x1]
    %19 = vrot.lane.b32.xlu0 %v18, 104
    %v20 = vpop.permute.xlu0 %19
    %vm21 = vcmask 917312
    %22 = vst.msk [vmem:[#allocation0] sm:$0x1] %vm21, %v20
    %s23 = scalar_lea.vmem %s0, 12
    %v24 = vld [vmem:[%s23] sm:$0x1]
    %25 = vrot.lane.b32.xlu0 %v24, 96
    %v26 = vpop.permute.xlu0 %25
    %vm27 = vcmask 851712
    %28 = vst.msk [vmem:[#allocation0] sm:$0x1] %vm27, %v26
    %s29 = scalar_lea.vmem %s0, 11
    %v30 = vld [vmem:[%s29] sm:$0x1]
    %31 = vrot.lane.b32.xlu0 %v30, 88
    %v32 = vpop.permute.xlu0 %31
    %vm33 = vcmask 786112
    %34 = vst.msk [vmem:[#allocation0] sm:$0x1] %vm33, %v32
    %s35 = scalar_lea.vmem %s0, 10
    %v36 = vld [vmem:[%s35] sm:$0x1]
    %37 = vrot.lane.b32.xlu0 %v36, 80
    %v38 = vpop.permute.xlu0 %37
    %vm39 = vcmask 720512
    %40 = vst.msk [vmem:[#allocation0] sm:$0x1] %vm39, %v38
    %s41 = scalar_lea.vmem %s0, 9
    %v42 = vld [vmem:[%s41] sm:$0x1]
    %43 = vrot.lane.b32.xlu0 %v42, 72
    %v44 = vpop.permute.xlu0 %43
    %vm45 = vcmask 654912
    %46 = vst.msk [vmem:[#allocation0] sm:$0x1] %vm45, %v44
    %s47 = scalar_lea.vmem %s0, 8
    %v48 = vld [vmem:[%s47] sm:$0x1]
    %49 = vrot.lane.b32.xlu0 %v48, 64
    %v50 = vpop.permute.xlu0 %49
    %vm51 = vcmask 589312
    %52 = vst.msk [vmem:[#allocation0] sm:$0x1] %vm51, %v50
    %s53 = scalar_lea.vmem %s0, 7
    %v54 = vld [vmem:[%s53] sm:$0x1]
    %55 = vrot.lane.b32.xlu0 %v54, 56
    %v56 = vpop.permute.xlu0 %55
    %vm57 = vcmask 523712
    %58 = vst.msk [vmem:[#allocation0] sm:$0x1] %vm57, %v56
    %s59 = scalar_lea.vmem %s0, 6
    %v60 = vld [vmem:[%s59] sm:$0x1]
    %61 = vrot.lane.b32.xlu0 %v60, 48
    %v62 = vpop.permute.xlu0 %61
    %vm63 = vcmask 458112
    %64 = vst.msk [vmem:[#allocation0] sm:$0x1] %vm63, %v62
    %s65 = scalar_lea.vmem %s0, 5
    %v66 = vld [vmem:[%s65] sm:$0x1]
    %67 = vrot.lane.b32.xlu0 %v66, 40
    %v68 = vpop.permute.xlu0 %67
    %vm69 = vcmask 392512
    %70 = vst.msk [vmem:[#allocation0] sm:$0x1] %vm69, %v68
    %s71 = scalar_lea.vmem %s0, 4
    %v72 = vld [vmem:[%s71] sm:$0x1]
    %73 = vrot.lane.b32.xlu0 %v72, 32
    %v74 = vpop.permute.xlu0 %73
    %vm75 = vcmask 326912
    %76 = vst.msk [vmem:[#allocation0] sm:$0x1] %vm75, %v74
    %s77 = scalar_lea.vmem %s0, 3
    %v78 = vld [vmem:[%s77] sm:$0x1]
    %79 = vrot.lane.b32.xlu0 %v78, 24
    %v80 = vpop.permute.xlu0 %79
    %vm81 = vcmask 261312
    %82 = vst.msk [vmem:[#allocation0] sm:$0x1] %vm81, %v80
    %s83 = scalar_lea.vmem %s0, 2
    %v84 = vld [vmem:[%s83] sm:$0x1]
    %85 = vrot.lane.b32.xlu0 %v84, 16
    %v86 = vpop.permute.xlu0 %85
    %vm87 = vcmask 195712
    %88 = vst.msk [vmem:[#allocation0] sm:$0x1] %vm87, %v86
    %s89 = scalar_lea.vmem %s0, 1
    %v90 = vld [vmem:[%s89] sm:$0x1]
    %91 = vrot.lane.b32.xlu0 %v90, 8
    %v92 = vpop.permute.xlu0 %91
    %vm93 = vcmask 130112
    %94 = vst.msk [vmem:[#allocation0] sm:$0x1] %vm93, %v92
    %s96 = sshllo.u32 0, 1
    %v98 = vld [vmem:[#allocation0] sm:%s96]
    %s99 = sshllo.u32 0, 1
    %100 = vst [vmem:[%s1] sm:%s99] %v98

// kernel: model_forward.1
$region0: #{model_forward.1}
  #allocation0 [shape = 'u32[]', space=smem, size = 0x4, offset = 0x4, fixed_abs, tag = 'smem constant byte address 0x4 - core index']
  #allocation1 [shape = 'u32[144,128]{1,0:T(1,128)}', space=vmem, size = 0x12000, scoped, tag = 'internal scratch']
  %s0 = inlined_call_operand.vmem [shape: f32[37,48], index: 0, kind: input, shape index: {}]
  %s1 = inlined_call_operand.vmem [shape: f32[48,128], index: 1, kind: input, shape index: {}]
  %s2 = inlined_call_operand.vmem [shape: f32[1,128], index: 2, kind: input, shape index: {}]
  %s3 = inlined_call_operand.vmem [shape: f32[37,128], index: 3, kind: output, shape index: {}]
  %s4 = sld [smem:[#allocation0]]
  $region93: #{model_forward.1} parent=0
    _
  %s6 = ssub.s32 1, %s4
  %s7 = scalar_select 0, %s6, %s4
  $region1: #{model_forward.1} parent=0
    #allocation2 [shape = 'u8[24576]{0}', space=vmem, size = 0x6000, scoped, tag = 'output window, operand 0']
    loop: start=0, step=1, limit=4
    $region2: #{model_forward.1} parent=1 // loop_pre_header
      _
    $region3: #{model_forward.1} parent=1 // loop_header
      %s9 = sphi 0, %s13
      %p10 = scmp.ge.s32.totalorder %s9, 4
      %s19 = sphi 0, %s21
      %s22 = sphi 0, %s19
      %s23 = sphi 0, %s22
      %s39 = sphi 0, %s23
      %s43 = sphi 0, %s43
      %s45 = sphi 0, %s43
      %s46 = sphi 0, %s45
      %s60 = sphi 0, %s46
      %s64 = sphi 0, %s64
      %s66 = sphi 0, %s64
      %s67 = sphi 0, %s66
      %s81 = sphi 0, %s67
      %s87 = sphi 0, %s89
      %s90 = sphi 0, %s87
      %s91 = sphi 0, %s90
      %s107 = sphi 0, %s91
    $region4: #{model_forward.1} parent=1 // loop_header_branch
      %12 = sbr.rel (%p10) target = $region8
    $region5: #{model_forward.1} parent=1 // loop_body
      %s14 = ssub.s32 %s9, 1
      %s15 = ssub.s32 %s9, 2
      %s16 = sadd.s32 %s9, 1
      %s17 = ssub.s32 %s9, %s16
      %p18 = scmp.eq.s32.totalorder %s17, 0
      %s20 = sadd.s32 %s19, 1
      %s21 = scalar_select %p18, %s19, %s20
      %p24 = pneg %p18
      %p25 = scmp.eq.s32.totalorder %s9, 1
      %p26 = por %p24, %p25
      %p27 = scmp.ne.s32.totalorder %s19, %s22
      %p28 = scmp.eq.s32.totalorder %s9, 0
      %p29 = por %p27, %p28
      %p30 = scmp.ne.s32.totalorder %s19, %s22
      %p31 = scmp.eq.s32.totalorder %s14, 1
      %p32 = por %p30, %p31
      %p33 = scmp.ne.s32.totalorder %s22, %s23
      %p34 = scmp.eq.s32.totalorder %s14, 0
      %p35 = por %p33, %p34
      %p36 = scmp.ne.s32.totalorder %s22, %s23
      %p37 = scmp.eq.s32.totalorder %s15, 1
      %p38 = por %p36, %p37
      %p40 = scmp.ne.s32.totalorder %s23, %s39
      %p41 = scmp.eq.s32.totalorder %s15, 0
      %p42 = por %p40, %p41
      %s44 = sadd.s32 %s43, 1
      %p47 = scmp.eq.s32.totalorder %s9, 1
      %p48 = scmp.ne.s32.totalorder %s43, %s45
      %p49 = scmp.eq.s32.totalorder %s9, 0
      %p50 = por %p48, %p49
      %p51 = scmp.ne.s32.totalorder %s43, %s45
      %p52 = scmp.eq.s32.totalorder %s14, 1
      %p53 = por %p51, %p52
      %p54 = scmp.ne.s32.totalorder %s45, %s46
      %p55 = scmp.eq.s32.totalorder %s14, 0
      %p56 = por %p54, %p55
      %p57 = scmp.ne.s32.totalorder %s45, %s46
      %p58 = scmp.eq.s32.totalorder %s15, 1
      %p59 = por %p57, %p58
      %p61 = scmp.ne.s32.totalorder %s46, %s60
      %p62 = scmp.eq.s32.totalorder %s15, 0
      %p63 = por %p61, %p62
      %s65 = sadd.s32 %s64, 1
      %p68 = scmp.eq.s32.totalorder %s9, 1
      %p69 = scmp.ne.s32.totalorder %s64, %s66
      %p70 = scmp.eq.s32.totalorder %s9, 0
      %p71 = por %p69, %p70
      %p72 = scmp.ne.s32.totalorder %s64, %s66
      %p73 = scmp.eq.s32.totalorder %s14, 1
      %p74 = por %p72, %p73
      %p75 = scmp.ne.s32.totalorder %s66, %s67
      %p76 = scmp.eq.s32.totalorder %s14, 0
      %p77 = por %p75, %p76
      %p78 = scmp.ne.s32.totalorder %s66, %s67
      %p79 = scmp.eq.s32.totalorder %s15, 1
      %p80 = por %p78, %p79
      %p82 = scmp.ne.s32.totalorder %s67, %s81
      %p83 = scmp.eq.s32.totalorder %s15, 0
      %p84 = por %p82, %p83
      %s85 = ssub.s32 %s9, %s16
      %p86 = scmp.eq.s32.totalorder %s85, 0
      %s88 = sadd.s32 %s87, 1
      %s89 = scalar_select %p86, %s87, %s88
      %p92 = pneg %p86
      %p93 = scmp.eq.s32.totalorder %s9, 1
      %p94 = por %p92, %p93
      %p95 = scmp.ne.s32.totalorder %s87, %s90
      %p96 = scmp.eq.s32.totalorder %s9, 0
      %p97 = por %p95, %p96
      %p98 = scmp.ne.s32.totalorder %s87, %s90
      %p99 = scmp.eq.s32.totalorder %s14, 1
      %p100 = por %p98, %p99
      %p101 = scmp.ne.s32.totalorder %s90, %s91
      %p102 = scmp.eq.s32.totalorder %s14, 0
      %p103 = por %p101, %p102
      %p104 = scmp.ne.s32.totalorder %s90, %s91
      %p105 = scmp.eq.s32.totalorder %s15, 1
      %p106 = por %p104, %p105
      %p108 = scmp.ne.s32.totalorder %s91, %s107
      %p109 = scmp.eq.s32.totalorder %s15, 0
      %p110 = por %p108, %p109
      %p111 = scmp.le.s32.totalorder 1, %s9
      %p112 = scmp.lt.s32.totalorder %s9, 3
      %p113 = pnand %p111, %p112
      %p114 = pneg %p113
      // Predicated region
      $region9: #{model_forward.1} parent=5 // pred_check
        _
      $region10: #{model_forward.1} parent=5 // pred_check_branch
        %116 = sbr.rel (%p113) target = $region12
      $region11: #{model_forward.1} parent=5 // pred_region
        %s117 = ssub.s32 %s9, 1
        // Predicated region
        $region13: #{model_forward.1} parent=11 // pred_check
          %p118 = pneg %p56
        $region14: #{model_forward.1} parent=11 // pred_check_branch
          %120 = sbr.rel (%p118) target = $region16
        $region15: #{model_forward.1} parent=11 // pred_region
          _
        $region16: #{model_forward.1} parent=11 // pred_fallthru
          _
        // Predicated region
        $region17: #{model_forward.1} parent=11 // pred_check
          %p121 = pneg %p77
        $region18: #{model_forward.1} parent=11 // pred_check_branch
          %123 = sbr.rel (%p121) target = $region20
        $region19: #{model_forward.1} parent=11 // pred_region
          _
        $region20: #{model_forward.1} parent=11 // pred_fallthru
          _
      $region12: #{model_forward.1} parent=5 // pred_fallthru
        _
      %p124 = scmp.lt.s32.totalorder %s9, 2
      // Predicated region
      $region21: #{model_forward.1} parent=5 // pred_check
        %p125 = pneg %p124
      $region22: #{model_forward.1} parent=5 // pred_check_branch
        %127 = sbr.rel (%p125) target = $region24
      $region23: #{model_forward.1} parent=5 // pred_region
        // Predicated region
        $region25: #{model_forward.1} parent=23 // pred_check
          %p128 = pneg %p29
        $region26: #{model_forward.1} parent=23 // pred_check_branch
          %130 = sbr.rel (%p128) target = $region28
        $region27: #{model_forward.1} parent=23 // pred_region
          %s131 = smul.u32 3, %s9
          %s132 = ssub.s32 5, %s131
          %p133 = scmp.lt.s32.totalorder %s132, 3
          %s134 = scalar_select %p133, %s132, 3
          %s135 = smul.u32 128, %s134
          %p136 = scmp.lt.s32.totalorder %s131, 4
          %s137 = scalar_select %p136, %s131, 4
          %s138 = smul.addr %s137, 8
          %s139 = scalar_lea.vmem %s0, %s138
          %s140 = smul.u32 3, %s9
          %s141 = ssub.s32 5, %s140
          %p142 = scmp.lt.s32.totalorder %s141, 3
          %s143 = scalar_select %p142, %s141, 3
          %s144 = smul.u32 128, %s143
        $region28: #{model_forward.1} parent=23 // pred_fallthru
          _
      $region24: #{model_forward.1} parent=5 // pred_fallthru
        _
      %p145 = scmp.le.s32.totalorder 1, %s9
      %p146 = scmp.lt.s32.totalorder %s9, 3
      %p147 = pnand %p145, %p146
      %p148 = pneg %p147
      // Predicated region
      $region29: #{model_forward.1} parent=5 // pred_check
        _
      $region30: #{model_forward.1} parent=5 // pred_check_branch
        %150 = sbr.rel (%p147) target = $region32
      $region31: #{model_forward.1} parent=5 // pred_region
        %s151 = ssub.s32 %s9, 1
        %s152 = smul.u32 3, %s14
        %s153 = ssub.s32 5, %s152
        %p154 = scmp.lt.s32.totalorder %s153, 3
        %s155 = scalar_select %p154, %s153, 3
        %s156 = smul.u32 128, %s155
        %p157 = scmp.lt.s32.totalorder %s152, 4
        %s158 = scalar_select %p157, %s152, 4
        %s159 = smul.addr %s158, 8
        %s160 = scalar_lea.vmem %s0, %s159
        %p161 = pneg %p35
        %p162 = pneg %p32
        %p163 = pneg %p56
        %p164 = pneg %p53
        %p165 = pneg %p77
        %p166 = pneg %p74
        %p167 = pneg %p103
        %p168 = pneg %p100
        %s169 = sand.u32 %s90, 1
        %s170 = sand.u32 %s90, 1
        %s171 = smul.addr %s170, 24
        %s172 = scalar_lea.vmem [#allocation2], %s171
        %s173 = smul.u32 3, %s14
        %s174 = ssub.s32 5, %s173
        %p175 = scmp.lt.s32.totalorder %s174, 3
        %s176 = scalar_select %p175, %s174, 3
        %s177 = smul.u32 128, %s176
        %p178 = scmp.lt.s32.totalorder %s173, 4
        %s179 = scalar_select %p178, %s173, 4
        %s180 = smul.addr %s179, 8
        %s181 = scalar_lea.vmem %s0, %s180
        %s182 = smul.u32 3, %s14
        %s183 = ssub.s32 5, %s182
        %p184 = scmp.lt.s32.totalorder %s183, 3
        %s185 = scalar_select %p184, %s183, 3
        %s186 = smul.u32 128, %s185
        %s187 = smul.u32 3, %s14
        %s188 = ssub.s32 5, %s187
        %p189 = scmp.lt.s32.totalorder %s188, 3
        %s190 = scalar_select %p189, %s188, 3
        %s191 = smul.u32 128, %s190
        %v192 = vld [vmem:[%s181] sm:$0xff]
        %v193 = vld [vmem:[%s181 + $0x8] sm:$0xff]
        %v194 = vld [vmem:[%s181 + $0x10] sm:$0xff]
        %v195 = vld [vmem:[%s1] sm:$0xff]
        %v196 = vld [vmem:[%s1 + $0x8] sm:$0xff]
        %v197 = vld [vmem:[%s1 + $0x10] sm:$0xff]
        %v198 = vld [vmem:[%s1 + $0x18] sm:$0xff]
        %v199 = vld [vmem:[%s1 + $0x20] sm:$0xff]
        %v200 = vld [vmem:[%s1 + $0x28] sm:$0xff]
        %v201 = vld [vmem:[%s2] sm:$0x1]
        %v203 = vlaneseq
        %v204 = vshrl.u32 %v203, 7
        %v205 = vsub.s32 0, %v204
        %v206 = vrot.slane %v201, %v205
        %vm208 = vcmask 392192
        %v210 = vsel %vm208, %v192, 0
        %v213 = vsel %vm208, %v193, 0
        %v216 = vsel %vm208, %v194, 0
        %218 = vmatprep.subr.mxu0 0.0
        %v219 = vand.u32 %v195, 4294901760
        %220 = vmatpush1.msra.mxu0 %v219
        %221 = vmatprep.subr.mxu0 0.0
        %v222 = vand.u32 %v196, 4294901760
        %223 = vmatpush1.msra.mxu0 %v222
        %224 = vmatprep.subr.mxu0 0.0
        %v225 = vand.u32 %v197, 4294901760
        %226 = vmatpush1.msra.mxu0 %v225
        %227 = vmatprep.subr.mxu0 0.0
        %v228 = vand.u32 %v198, 4294901760
        %229 = vmatpush1.msra.mxu0 %v228
        %230 = vmatprep.subr.mxu0 0.0
        %v231 = vand.u32 %v199, 4294901760
        %232 = vmatpush1.msra.mxu0 %v231
        %233 = vmatprep.subr.mxu0 0.0
        %v234 = vand.u32 %v200, 4294901760
        %235 = vmatpush1.msra.mxu0 %v234
        %236 = vmatprep.subr.mxu0 0.0
        %237 = vmatpush1.msra.mxu0 0.0
        %238 = vmatprep.subr.mxu0 0.0
        %239 = vmatpush1.msra.mxu0 0.0
        %240 = vmatprep.subr.mxu0 0.0
        %241 = vmatpush1.msra.mxu0 0.0
        %242 = vmatprep.subr.mxu0 0.0
        %243 = vmatpush1.msra.mxu0 0.0
        %244 = vmatprep.subr.mxu0 0.0
        %245 = vmatpush1.msra.mxu0 0.0
        %246 = vmatprep.subr.mxu0 0.0
        %247 = vmatpush1.msra.mxu0 0.0
        %248 = vmatprep.subr.mxu0 0.0
        %249 = vmatpush1.msra.mxu0 0.0
        %250 = vmatprep.subr.mxu0 0.0
        %251 = vmatpush1.msra.mxu0 0.0
        %252 = vmatprep.subr.mxu0 0.0
        %253 = vmatpush1.msra.mxu0 0.0
        %254 = vmatprep.subr.mxu0 0.0
        %255 = vmatpush1.msra.mxu0 0.0
        %256 = vmatprep.subr.mxu0 0.0
        %257 = vmatpush1.msra.mxu0 0.0
        %258 = vmatprep.subr.mxu0 0.0
        %259 = vmatpush1.msra.mxu0 0.0
        %260 = vmatprep.subr.mxu0 0.0
        %261 = vmatpush1.msra.mxu0 0.0
        %262 = vmatprep.subr.mxu0 0.0
        %263 = vmatpush1.msra.mxu0 0.0
        %264 = vmatprep.subr.mxu0 0.0
        %265 = vmatpush1.msra.mxu0 0.0
        %266 = vmatprep.subr.mxu0 0.0
        %267 = vmatpush1.msra.mxu0 0.0
        %268 = vmatprep.subr.mxu0 0.0
        %269 = vmatpush1.msra.mxu0 0.0
        %270 = vmatprep.subr.mxu0 0.0
        %271 = vmatpush1.msra.mxu0 0.0
        %272 = vmatprep.subr.mxu0 0.0
        %273 = vmatpush1.msra.mxu0 0.0
        %274 = vmatprep.subr.mxu0 0.0
        %275 = vmatpush1.msra.mxu0 0.0
        %276 = vmatprep.subr.mxu0 0.0
        %277 = vmatpush1.msra.mxu0 0.0
        %278 = vmatprep.subr.mxu0 0.0
        %279 = vmatpush1.msra.mxu0 0.0
        %280 = vmatprep.subr.mxu0 0.0
        %281 = vmatpush1.msra.mxu0 0.0
        %282 = vmatprep.subr.mxu0 0.0
        %283 = vmatpush1.msra.mxu0 0.0
        %284 = vmatprep.subr.mxu0 0.0
        %285 = vmatpush1.msra.mxu0 0.0
        %286 = vmatprep.subr.mxu0 0.0
        %287 = vmatpush1.msra.mxu0 0.0
        %288 = vmatprep.mubr.f32.mxu0 0.0
        %v289 = vand.u32 %v210, 4294901760
        %v290 = vsub.f32 %v210, %v289
        %v291 = vand.u32 %v290, 4294901760
        %v292 = vsub.f32 %v290, %v291
        %v293 = vand.u32 %v292, 4294901760
        %294 = vmatmul.mubr.f32.gmra.mrb[0].mxu0 %v293
        %v295 = vpop.f32.mrb[0].mxu0
        %v296 = vadd.f32 %v206, %v295
        %v297 = vpop.f32.mrb[0].mxu0
        %298 = vmatprep.mubr.f32.mxu0 0.0
        %v299 = vand.u32 %v213, 4294901760
        %v300 = vsub.f32 %v213, %v299
        %v301 = vand.u32 %v300, 4294901760
        %v302 = vsub.f32 %v300, %v301
        %v303 = vand.u32 %v302, 4294901760
        %304 = vmatmul.mubr.f32.gmra.mrb[0].mxu0 %v303
        %v305 = vpop.f32.mrb[0].mxu0
        %v306 = vadd.f32 %v206, %v305
        %v307 = vpop.f32.mrb[0].mxu0
        %308 = vmatprep.mubr.f32.mxu0 0.0
        %v309 = vand.u32 %v216, 4294901760
        %v310 = vsub.f32 %v216, %v309
        %v311 = vand.u32 %v310, 4294901760
        %v312 = vsub.f32 %v310, %v311
        %v313 = vand.u32 %v312, 4294901760
        %314 = vmatmul.mubr.f32.gmra.mrb[0].mxu0 %v313
        %v315 = vpop.f32.mrb[0].mxu0
        %v316 = vadd.f32 %v206, %v315
        %v317 = vpop.f32.mrb[0].mxu0
        %318 = vdwg.mxu0
        %319 = vmatprep.subr.mxu0 0.0
        %v320 = vand.u32 %v195, 4294901760
        %v321 = vsub.f32 %v195, %v320
        %v322 = vand.u32 %v321, 4294901760
        %v323 = vsub.f32 %v321, %v322
        %v324 = vand.u32 %v323, 4294901760
        %325 = vmatpush1.msra.mxu0 %v324
        %326 = vmatprep.subr.mxu0 0.0
        %v327 = vand.u32 %v196, 4294901760
        %v328 = vsub.f32 %v196, %v327
        %v329 = vand.u32 %v328, 4294901760
        %v330 = vsub.f32 %v328, %v329
        %v331 = vand.u32 %v330, 4294901760
        %332 = vmatpush1.msra.mxu0 %v331
        %333 = vmatprep.subr.mxu0 0.0
        %v334 = vand.u32 %v197, 4294901760
        %v335 = vsub.f32 %v197, %v334
        %v336 = vand.u32 %v335, 4294901760
        %v337 = vsub.f32 %v335, %v336
        %v338 = vand.u32 %v337, 4294901760
        %339 = vmatpush1.msra.mxu0 %v338
        %340 = vmatprep.subr.mxu0 0.0
        %v341 = vand.u32 %v198, 4294901760
        %v342 = vsub.f32 %v198, %v341
        %v343 = vand.u32 %v342, 4294901760
        %v344 = vsub.f32 %v342, %v343
        %v345 = vand.u32 %v344, 4294901760
        %346 = vmatpush1.msra.mxu0 %v345
        %347 = vmatprep.subr.mxu0 0.0
        %v348 = vand.u32 %v199, 4294901760
        %v349 = vsub.f32 %v199, %v348
        %v350 = vand.u32 %v349, 4294901760
        %v351 = vsub.f32 %v349, %v350
        %v352 = vand.u32 %v351, 4294901760
        %353 = vmatpush1.msra.mxu0 %v352
        %354 = vmatprep.subr.mxu0 0.0
        %v355 = vand.u32 %v200, 4294901760
        %v356 = vsub.f32 %v200, %v355
        %v357 = vand.u32 %v356, 4294901760
        %v358 = vsub.f32 %v356, %v357
        %v359 = vand.u32 %v358, 4294901760
        %360 = vmatpush1.msra.mxu0 %v359
        %361 = vmatprep.subr.mxu0 0.0
        %362 = vmatpush1.msra.mxu0 0.0
        %363 = vmatprep.subr.mxu0 0.0
        %364 = vmatpush1.msra.mxu0 0.0
        %365 = vmatprep.subr.mxu0 0.0
        %366 = vmatpush1.msra.mxu0 0.0
        %367 = vmatprep.subr.mxu0 0.0
        %368 = vmatpush1.msra.mxu0 0.0
        %369 = vmatprep.subr.mxu0 0.0
        %370 = vmatpush1.msra.mxu0 0.0
        %371 = vmatprep.subr.mxu0 0.0
        %372 = vmatpush1.msra.mxu0 0.0
        %373 = vmatprep.subr.mxu0 0.0
        %374 = vmatpush1.msra.mxu0 0.0
        %375 = vmatprep.subr.mxu0 0.0
        %376 = vmatpush1.msra.mxu0 0.0
        %377 = vmatprep.subr.mxu0 0.0
        %378 = vmatpush1.msra.mxu0 0.0
        %379 = vmatprep.subr.mxu0 0.0
        %380 = vmatpush1.msra.mxu0 0.0
        %381 = vmatprep.subr.mxu0 0.0
        %382 = vmatpush1.msra.mxu0 0.0
        %383 = vmatprep.subr.mxu0 0.0
        %384 = vmatpush1.msra.mxu0 0.0
        %385 = vmatprep.subr.mxu0 0.0
        %386 = vmatpush1.msra.mxu0 0.0
        %387 = vmatprep.subr.mxu0 0.0
        %388 = vmatpush1.msra.mxu0 0.0
        %389 = vmatprep.subr.mxu0 0.0
        %390 = vmatpush1.msra.mxu0 0.0
        %391 = vmatprep.subr.mxu0 0.0
        %392 = vmatpush1.msra.mxu0 0.0
        %393 = vmatprep.subr.mxu0 0.0
        %394 = vmatpush1.msra.mxu0 0.0
        %395 = vmatprep.subr.mxu0 0.0
        %396 = vmatpush1.msra.mxu0 0.0
        %397 = vmatprep.subr.mxu0 0.0
        %398 = vmatpush1.msra.mxu0 0.0
        %399 = vmatprep.subr.mxu0 0.0
        %400 = vmatpush1.msra.mxu0 0.0
        %401 = vmatprep.subr.mxu0 0.0
        %402 = vmatpush1.msra.mxu0 0.0
        %403 = vmatprep.subr.mxu0 0.0
        %404 = vmatpush1.msra.mxu0 0.0
        %405 = vmatprep.subr.mxu0 0.0
        %406 = vmatpush1.msra.mxu0 0.0
        %407 = vmatprep.subr.mxu0 0.0
        %408 = vmatpush1.msra.mxu0 0.0
        %409 = vmatprep.subr.mxu0 0.0
        %410 = vmatpush1.msra.mxu0 0.0
        %411 = vmatprep.subr.mxu0 0.0
        %412 = vmatpush1.msra.mxu0 0.0
        %413 = vmatprep.mubr.f32.mxu0 0.0
        %v414 = vand.u32 %v210, 4294901760
        %415 = vmatmul.mubr.f32.gmra.mrb[0].mxu0 %v414
        %v416 = vpop.f32.mrb[0].mxu0
        %v417 = vadd.f32 %v296, %v416
        %v418 = vpop.f32.mrb[0].mxu0
        %419 = vmatprep.mubr.f32.mxu0 0.0
        %v420 = vand.u32 %v213, 4294901760
        %421 = vmatmul.mubr.f32.gmra.mrb[0].mxu0 %v420
        %v422 = vpop.f32.mrb[0].mxu0
        %v423 = vadd.f32 %v306, %v422
        %v424 = vpop.f32.mrb[0].mxu0
        %425 = vmatprep.mubr.f32.mxu0 0.0
        %v426 = vand.u32 %v216, 4294901760
        %427 = vmatmul.mubr.f32.gmra.mrb[0].mxu0 %v426
        %v428 = vpop.f32.mrb[0].mxu0
        %v429 = vadd.f32 %v316, %v428
        %v430 = vpop.f32.mrb[0].mxu0
        %431 = vdwg.mxu0
        %432 = vmatprep.subr.mxu0 0.0
        %v433 = vand.u32 %v195, 4294901760
        %v434 = vsub.f32 %v195, %v433
        %435 = vmatpush1.msra.mxu0 %v434
        %436 = vmatprep.subr.mxu0 0.0
        %v437 = vand.u32 %v196, 4294901760
        %v438 = vsub.f32 %v196, %v437
        %439 = vmatpush1.msra.mxu0 %v438
        %440 = vmatprep.subr.mxu0 0.0
        %v441 = vand.u32 %v197, 4294901760
        %v442 = vsub.f32 %v197, %v441
        %443 = vmatpush1.msra.mxu0 %v442
        %444 = vmatprep.subr.mxu0 0.0
        %v445 = vand.u32 %v198, 4294901760
        %v446 = vsub.f32 %v198, %v445
        %447 = vmatpush1.msra.mxu0 %v446
        %448 = vmatprep.subr.mxu0 0.0
        %v449 = vand.u32 %v199, 4294901760
        %v450 = vsub.f32 %v199, %v449
        %451 = vmatpush1.msra.mxu0 %v450
        %452 = vmatprep.subr.mxu0 0.0
        %v453 = vand.u32 %v200, 4294901760
        %v454 = vsub.f32 %v200, %v453
        %455 = vmatpush1.msra.mxu0 %v454
        %456 = vmatprep.subr.mxu0 0.0
        %457 = vmatpush1.msra.mxu0 0.0
        %458 = vmatprep.subr.mxu0 0.0
        %459 = vmatpush1.msra.mxu0 0.0
        %460 = vmatprep.subr.mxu0 0.0
        %461 = vmatpush1.msra.mxu0 0.0
        %462 = vmatprep.subr.mxu0 0.0
        %463 = vmatpush1.msra.mxu0 0.0
        %464 = vmatprep.subr.mxu0 0.0
        %465 = vmatpush1.msra.mxu0 0.0
        %466 = vmatprep.subr.mxu0 0.0
        %467 = vmatpush1.msra.mxu0 0.0
        %468 = vmatprep.subr.mxu0 0.0
        %469 = vmatpush1.msra.mxu0 0.0
        %470 = vmatprep.subr.mxu0 0.0
        %471 = vmatpush1.msra.mxu0 0.0
        %472 = vmatprep.subr.mxu0 0.0
        %473 = vmatpush1.msra.mxu0 0.0
        %474 = vmatprep.subr.mxu0 0.0
        %475 = vmatpush1.msra.mxu0 0.0
        %476 = vmatprep.subr.mxu0 0.0
        %477 = vmatpush1.msra.mxu0 0.0
        %478 = vmatprep.subr.mxu0 0.0
        %479 = vmatpush1.msra.mxu0 0.0
        %480 = vmatprep.subr.mxu0 0.0
        %481 = vmatpush1.msra.mxu0 0.0
        %482 = vmatprep.subr.mxu0 0.0
        %483 = vmatpush1.msra.mxu0 0.0
        %484 = vmatprep.subr.mxu0 0.0
        %485 = vmatpush1.msra.mxu0 0.0
        %486 = vmatprep.subr.mxu0 0.0
        %487 = vmatpush1.msra.mxu0 0.0
        %488 = vmatprep.subr.mxu0 0.0
        %489 = vmatpush1.msra.mxu0 0.0
        %490 = vmatprep.subr.mxu0 0.0
        %491 = vmatpush1.msra.mxu0 0.0
        %492 = vmatprep.subr.mxu0 0.0
        %493 = vmatpush1.msra.mxu0 0.0
        %494 = vmatprep.subr.mxu0 0.0
        %495 = vmatpush1.msra.mxu0 0.0
        %496 = vmatprep.subr.mxu0 0.0
        %497 = vmatpush1.msra.mxu0 0.0
        %498 = vmatprep.subr.mxu0 0.0
        %499 = vmatpush1.msra.mxu0 0.0
        %500 = vmatprep.subr.mxu0 0.0
        %501 = vmatpush1.msra.mxu0 0.0
        %502 = vmatprep.subr.mxu0 0.0
        %503 = vmatpush1.msra.mxu0 0.0
        %504 = vmatprep.subr.mxu0 0.0
        %505 = vmatpush1.msra.mxu0 0.0
        %506 = vmatprep.subr.mxu0 0.0
        %507 = vmatpush1.msra.mxu0 0.0
        %508 = vmatprep.mubr.f32.mxu0 0.0
        %v509 = vand.u32 %v210, 4294901760
        %v510 = vsub.f32 %v210, %v509
        %511 = vmatmul.mubr.f32.gmra.mrb[0].mxu0 %v510
        %v512 = vpop.f32.mrb[0].mxu0
        %v513 = vadd.f32 %v417, %v512
        %v514 = vpop.f32.mrb[0].mxu0
        %515 = vmatprep.mubr.f32.mxu0 0.0
        %v516 = vand.u32 %v213, 4294901760
        %v517 = vsub.f32 %v213, %v516
        %518 = vmatmul.mubr.f32.gmra.mrb[0].mxu0 %v517
        %v519 = vpop.f32.mrb[0].mxu0
        %v520 = vadd.f32 %v423, %v519
        %v521 = vpop.f32.mrb[0].mxu0
        %522 = vmatprep.mubr.f32.mxu0 0.0
        %v523 = vand.u32 %v216, 4294901760
        %v524 = vsub.f32 %v216, %v523
        %525 = vmatmul.mubr.f32.gmra.mrb[0].mxu0 %v524
        %v526 = vpop.f32.mrb[0].mxu0
        %v527 = vadd.f32 %v429, %v526
        %v528 = vpop.f32.mrb[0].mxu0
        %529 = vdwg.mxu0
        %530 = vmatprep.subr.mxu0 0.0
        %v531 = vand.u32 %v195, 4294901760
        %532 = vmatpush1.msra.mxu0 %v531
        %533 = vmatprep.subr.mxu0 0.0
        %v534 = vand.u32 %v196, 4294901760
        %535 = vmatpush1.msra.mxu0 %v534
        %536 = vmatprep.subr.mxu0 0.0
        %v537 = vand.u32 %v197, 4294901760
        %538 = vmatpush1.msra.mxu0 %v537
        %539 = vmatprep.subr.mxu0 0.0
        %v540 = vand.u32 %v198, 4294901760
        %541 = vmatpush1.msra.mxu0 %v540
        %542 = vmatprep.subr.mxu0 0.0
        %v543 = vand.u32 %v199, 4294901760
        %544 = vmatpush1.msra.mxu0 %v543
        %545 = vmatprep.subr.mxu0 0.0
        %v546 = vand.u32 %v200, 4294901760
        %547 = vmatpush1.msra.mxu0 %v546
        %548 = vmatprep.subr.mxu0 0.0
        %549 = vmatpush1.msra.mxu0 0.0
        %550 = vmatprep.subr.mxu0 0.0
        %551 = vmatpush1.msra.mxu0 0.0
        %552 = vmatprep.subr.mxu0 0.0
        %553 = vmatpush1.msra.mxu0 0.0
        %554 = vmatprep.subr.mxu0 0.0
        %555 = vmatpush1.msra.mxu0 0.0
        %556 = vmatprep.subr.mxu0 0.0
        %557 = vmatpush1.msra.mxu0 0.0
        %558 = vmatprep.subr.mxu0 0.0
        %559 = vmatpush1.msra.mxu0 0.0
        %560 = vmatprep.subr.mxu0 0.0
        %561 = vmatpush1.msra.mxu0 0.0
        %562 = vmatprep.subr.mxu0 0.0
        %563 = vmatpush1.msra.mxu0 0.0
        %564 = vmatprep.subr.mxu0 0.0
        %565 = vmatpush1.msra.mxu0 0.0
        %566 = vmatprep.subr.mxu0 0.0
        %567 = vmatpush1.msra.mxu0 0.0
        %568 = vmatprep.subr.mxu0 0.0
        %569 = vmatpush1.msra.mxu0 0.0
        %570 = vmatprep.subr.mxu0 0.0
        %571 = vmatpush1.msra.mxu0 0.0
        %572 = vmatprep.subr.mxu0 0.0
        %573 = vmatpush1.msra.mxu0 0.0
        %574 = vmatprep.subr.mxu0 0.0
        %575 = vmatpush1.msra.mxu0 0.0
        %576 = vmatprep.subr.mxu0 0.0
        %577 = vmatpush1.msra.mxu0 0.0
        %578 = vmatprep.subr.mxu0 0.0
        %579 = vmatpush1.msra.mxu0 0.0
        %580 = vmatprep.subr.mxu0 0.0
        %581 = vmatpush1.msra.mxu0 0.0
        %582 = vmatprep.subr.mxu0 0.0
        %583 = vmatpush1.msra.mxu0 0.0
        %584 = vmatprep.subr.mxu0 0.0
        %585 = vmatpush1.msra.mxu0 0.0
        %586 = vmatprep.subr.mxu0 0.0
        %587 = vmatpush1.msra.mxu0 0.0
        %588 = vmatprep.subr.mxu0 0.0
        %589 = vmatpush1.msra.mxu0 0.0
        %590 = vmatprep.subr.mxu0 0.0
        %591 = vmatpush1.msra.mxu0 0.0
        %592 = vmatprep.subr.mxu0 0.0
        %593 = vmatpush1.msra.mxu0 0.0
        %594 = vmatprep.subr.mxu0 0.0
        %595 = vmatpush1.msra.mxu0 0.0
        %596 = vmatprep.subr.mxu0 0.0
        %597 = vmatpush1.msra.mxu0 0.0
        %598 = vmatprep.subr.mxu0 0.0
        %599 = vmatpush1.msra.mxu0 0.0
        %600 = vmatprep.mubr.f32.mxu0 0.0
        %v601 = vand.u32 %v210, 4294901760
        %v602 = vsub.f32 %v210, %v601
        %v603 = vand.u32 %v602, 4294901760
        %604 = vmatmul.mubr.f32.gmra.mrb[0].mxu0 %v603
        %v605 = vpop.f32.mrb[0].mxu0
        %v606 = vadd.f32 %v513, %v605
        %v607 = vpop.f32.mrb[0].mxu0
        %608 = vmatprep.mubr.f32.mxu0 0.0
        %v609 = vand.u32 %v213, 4294901760
        %v610 = vsub.f32 %v213, %v609
        %v611 = vand.u32 %v610, 4294901760
        %612 = vmatmul.mubr.f32.gmra.mrb[0].mxu0 %v611
        %v613 = vpop.f32.mrb[0].mxu0
        %v614 = vadd.f32 %v520, %v613
        %v615 = vpop.f32.mrb[0].mxu0
        %616 = vmatprep.mubr.f32.mxu0 0.0
        %v617 = vand.u32 %v216, 4294901760
        %v618 = vsub.f32 %v216, %v617
        %v619 = vand.u32 %v618, 4294901760
        %620 = vmatmul.mubr.f32.gmra.mrb[0].mxu0 %v619
        %v621 = vpop.f32.mrb[0].mxu0
        %v622 = vadd.f32 %v527, %v621
        %v623 = vpop.f32.mrb[0].mxu0
        %624 = vdwg.mxu0
        %625 = vmatprep.subr.mxu0 0.0
        %v626 = vand.u32 %v195, 4294901760
        %v627 = vsub.f32 %v195, %v626
        %v628 = vand.u32 %v627, 4294901760
        %629 = vmatpush1.msra.mxu0 %v628
        %630 = vmatprep.subr.mxu0 0.0
        %v631 = vand.u32 %v196, 4294901760
        %v632 = vsub.f32 %v196, %v631
        %v633 = vand.u32 %v632, 4294901760
        %634 = vmatpush1.msra.mxu0 %v633
        %635 = vmatprep.subr.mxu0 0.0
        %v636 = vand.u32 %v197, 4294901760
        %v637 = vsub.f32 %v197, %v636
        %v638 = vand.u32 %v637, 4294901760
        %639 = vmatpush1.msra.mxu0 %v638
        %640 = vmatprep.subr.mxu0 0.0
        %v641 = vand.u32 %v198, 4294901760
        %v642 = vsub.f32 %v198, %v641
        %v643 = vand.u32 %v642, 4294901760
        %644 = vmatpush1.msra.mxu0 %v643
        %645 = vmatprep.subr.mxu0 0.0
        %v646 = vand.u32 %v199, 4294901760
        %v647 = vsub.f32 %v199, %v646
        %v648 = vand.u32 %v647, 4294901760
        %649 = vmatpush1.msra.mxu0 %v648
        %650 = vmatprep.subr.mxu0 0.0
        %v651 = vand.u32 %v200, 4294901760
        %v652 = vsub.f32 %v200, %v651
        %v653 = vand.u32 %v652, 4294901760
        %654 = vmatpush1.msra.mxu0 %v653
        %655 = vmatprep.subr.mxu0 0.0
        %656 = vmatpush1.msra.mxu0 0.0
        %657 = vmatprep.subr.mxu0 0.0
        %658 = vmatpush1.msra.mxu0 0.0
        %659 = vmatprep.subr.mxu0 0.0
        %660 = vmatpush1.msra.mxu0 0.0
        %661 = vmatprep.subr.mxu0 0.0
        %662 = vmatpush1.msra.mxu0 0.0
        %663 = vmatprep.subr.mxu0 0.0
        %664 = vmatpush1.msra.mxu0 0.0
        %665 = vmatprep.subr.mxu0 0.0
        %666 = vmatpush1.msra.mxu0 0.0
        %667 = vmatprep.subr.mxu0 0.0
        %668 = vmatpush1.msra.mxu0 0.0
        %669 = vmatprep.subr.mxu0 0.0
        %670 = vmatpush1.msra.mxu0 0.0
        %671 = vmatprep.subr.mxu0 0.0
        %672 = vmatpush1.msra.mxu0 0.0
        %673 = vmatprep.subr.mxu0 0.0
        %674 = vmatpush1.msra.mxu0 0.0
        %675 = vmatprep.subr.mxu0 0.0
        %676 = vmatpush1.msra.mxu0 0.0
        %677 = vmatprep.subr.mxu0 0.0
        %678 = vmatpush1.msra.mxu0 0.0
        %679 = vmatprep.subr.mxu0 0.0
        %680 = vmatpush1.msra.mxu0 0.0
        %681 = vmatprep.subr.mxu0 0.0
        %682 = vmatpush1.msra.mxu0 0.0
        %683 = vmatprep.subr.mxu0 0.0
        %684 = vmatpush1.msra.mxu0 0.0
        %685 = vmatprep.subr.mxu0 0.0
        %686 = vmatpush1.msra.mxu0 0.0
        %687 = vmatprep.subr.mxu0 0.0
        %688 = vmatpush1.msra.mxu0 0.0
        %689 = vmatprep.subr.mxu0 0.0
        %690 = vmatpush1.msra.mxu0 0.0
        %691 = vmatprep.subr.mxu0 0.0
        %692 = vmatpush1.msra.mxu0 0.0
        %693 = vmatprep.subr.mxu0 0.0
        %694 = vmatpush1.msra.mxu0 0.0
        %695 = vmatprep.subr.mxu0 0.0
        %696 = vmatpush1.msra.mxu0 0.0
        %697 = vmatprep.subr.mxu0 0.0
        %698 = vmatpush1.msra.mxu0 0.0
        %699 = vmatprep.subr.mxu0 0.0
        %700 = vmatpush1.msra.mxu0 0.0
        %701 = vmatprep.subr.mxu0 0.0
        %702 = vmatpush1.msra.mxu0 0.0
        %703 = vmatprep.subr.mxu0 0.0
        %704 = vmatpush1.msra.mxu0 0.0
        %705 = vmatprep.subr.mxu0 0.0
        %706 = vmatpush1.msra.mxu0 0.0
        %707 = vmatprep.mubr.f32.mxu0 0.0
        %v708 = vand.u32 %v210, 4294901760
        %709 = vmatmul.mubr.f32.gmra.mrb[0].mxu0 %v708
        %v710 = vpop.f32.mrb[0].mxu0
        %v711 = vadd.f32 %v606, %v710
        %v712 = vpop.f32.mrb[0].mxu0
        %713 = vmatprep.mubr.f32.mxu0 0.0
        %v714 = vand.u32 %v213, 4294901760
        %715 = vmatmul.mubr.f32.gmra.mrb[0].mxu0 %v714
        %v716 = vpop.f32.mrb[0].mxu0
        %v717 = vadd.f32 %v614, %v716
        %v718 = vpop.f32.mrb[0].mxu0
        %719 = vmatprep.mubr.f32.mxu0 0.0
        %v720 = vand.u32 %v216, 4294901760
        %721 = vmatmul.mubr.f32.gmra.mrb[0].mxu0 %v720
        %v722 = vpop.f32.mrb[0].mxu0
        %v723 = vadd.f32 %v622, %v722
        %v724 = vpop.f32.mrb[0].mxu0
        %725 = vdwg.mxu0
        %726 = vmatprep.subr.mxu0 0.0
        %v727 = vand.u32 %v195, 4294901760
        %728 = vmatpush1.msra.mxu0 %v727
        %729 = vmatprep.subr.mxu0 0.0
        %v730 = vand.u32 %v196, 4294901760
        %731 = vmatpush1.msra.mxu0 %v730
        %732 = vmatprep.subr.mxu0 0.0
        %v733 = vand.u32 %v197, 4294901760
        %734 = vmatpush1.msra.mxu0 %v733
        %735 = vmatprep.subr.mxu0 0.0
        %v736 = vand.u32 %v198, 4294901760
        %737 = vmatpush1.msra.mxu0 %v736
        %738 = vmatprep.subr.mxu0 0.0
        %v739 = vand.u32 %v199, 4294901760
        %740 = vmatpush1.msra.mxu0 %v739
        %741 = vmatprep.subr.mxu0 0.0
        %v742 = vand.u32 %v200, 4294901760
        %743 = vmatpush1.msra.mxu0 %v742
        %744 = vmatprep.subr.mxu0 0.0
        %745 = vmatpush1.msra.mxu0 0.0
        %746 = vmatprep.subr.mxu0 0.0
        %747 = vmatpush1.msra.mxu0 0.0
        %748 = vmatprep.subr.mxu0 0.0
        %749 = vmatpush1.msra.mxu0 0.0
        %750 = vmatprep.subr.mxu0 0.0
        %751 = vmatpush1.msra.mxu0 0.0
        %752 = vmatprep.subr.mxu0 0.0
        %753 = vmatpush1.msra.mxu0 0.0
        %754 = vmatprep.subr.mxu0 0.0
        %755 = vmatpush1.msra.mxu0 0.0
        %756 = vmatprep.subr.mxu0 0.0
        %757 = vmatpush1.msra.mxu0 0.0
        %758 = vmatprep.subr.mxu0 0.0
        %759 = vmatpush1.msra.mxu0 0.0
        %760 = vmatprep.subr.mxu0 0.0
        %761 = vmatpush1.msra.mxu0 0.0
        %762 = vmatprep.subr.mxu0 0.0
        %763 = vmatpush1.msra.mxu0 0.0
        %764 = vmatprep.subr.mxu0 0.0
        %765 = vmatpush1.msra.mxu0 0.0
        %766 = vmatprep.subr.mxu0 0.0
        %767 = vmatpush1.msra.mxu0 0.0
        %768 = vmatprep.subr.mxu0 0.0
        %769 = vmatpush1.msra.mxu0 0.0
        %770 = vmatprep.subr.mxu0 0.0
        %771 = vmatpush1.msra.mxu0 0.0
        %772 = vmatprep.subr.mxu0 0.0
        %773 = vmatpush1.msra.mxu0 0.0
        %774 = vmatprep.subr.mxu0 0.0
        %775 = vmatpush1.msra.mxu0 0.0
        %776 = vmatprep.subr.mxu0 0.0
        %777 = vmatpush1.msra.mxu0 0.0
        %778 = vmatprep.subr.mxu0 0.0
        %779 = vmatpush1.msra.mxu0 0.0
        %780 = vmatprep.subr.mxu0 0.0
        %781 = vmatpush1.msra.mxu0 0.0
        %782 = vmatprep.subr.mxu0 0.0
        %783 = vmatpush1.msra.mxu0 0.0
        %784 = vmatprep.subr.mxu0 0.0
        %785 = vmatpush1.msra.mxu0 0.0
        %786 = vmatprep.subr.mxu0 0.0
        %787 = vmatpush1.msra.mxu0 0.0
        %788 = vmatprep.subr.mxu0 0.0
        %789 = vmatpush1.msra.mxu0 0.0
        %790 = vmatprep.subr.mxu0 0.0
        %791 = vmatpush1.msra.mxu0 0.0
        %792 = vmatprep.subr.mxu0 0.0
        %793 = vmatpush1.msra.mxu0 0.0
        %794 = vmatprep.subr.mxu0 0.0
        %795 = vmatpush1.msra.mxu0 0.0
        %796 = vmatprep.mubr.f32.mxu0 0.0
        %v797 = vand.u32 %v210, 4294901760
        %798 = vmatmul.mubr.f32.gmra.mrb[0].mxu0 %v797
        %v799 = vpop.f32.mrb[0].mxu0
        %v800 = vadd.f32 %v711, %v799
        %v801 = vpop.f32.mrb[0].mxu0
        %802 = vmatprep.mubr.f32.mxu0 0.0
        %v803 = vand.u32 %v213, 4294901760
        %804 = vmatmul.mubr.f32.gmra.mrb[0].mxu0 %v803
        %v805 = vpop.f32.mrb[0].mxu0
        %v806 = vadd.f32 %v717, %v805
        %v807 = vpop.f32.mrb[0].mxu0
        %808 = vmatprep.mubr.f32.mxu0 0.0
        %v809 = vand.u32 %v216, 4294901760
        %810 = vmatmul.mubr.f32.gmra.mrb[0].mxu0 %v809
        %v811 = vpop.f32.mrb[0].mxu0
        %v812 = vadd.f32 %v723, %v811
        %v813 = vpop.f32.mrb[0].mxu0
        %814 = vdwg.mxu0
        %815 = vst [vmem:[%s172] sm:$0xff] %v800
        %816 = vst [vmem:[%s172 + $0x8] sm:$0xff] %v806
        %817 = vst [vmem:[%s172 + $0x10] sm:$0xff] %v812
        %s818 = sand.u32 %s90, 1
        %s819 = sand.u32 %s90, 1
        %s820 = smul.addr %s819, 24
        %s821 = scalar_lea.vmem [#allocation2], %s820
        // Predicated region
        $region33: #{model_forward.1} parent=31 // pred_check
          %p822 = pneg %p100
        $region34: #{model_forward.1} parent=31 // pred_check_branch
          %824 = sbr.rel (%p822) target = $region36
        $region35: #{model_forward.1} parent=31 // pred_region
          %s825 = smul.u32 3, %s14
          %s826 = ssub.s32 5, %s825
          %p827 = scmp.lt.s32.totalorder %s826, 3
          %s828 = scalar_select %p827, %s826, 3
          %s829 = smul.u32 128, %s828
          %p830 = scmp.ne.s32.totalorder 0, %s829
          %s831 = smul.addr %s825, 8
          %s832 = scalar_lea.vmem %s3, %s831
          // Predicated region
          $region37: #{model_forward.1} parent=35 // pred_check
            %p833 = pneg %p830
          $region38: #{model_forward.1} parent=35 // pred_check_branch
            %835 = sbr.rel (%p833) target = $region40
          $region39: #{model_forward.1} parent=35 // pred_region
            // Predicated region
            $region41: #{model_forward.1} parent=39 // pred_check
              _
            $region42: #{model_forward.1} parent=39 // pred_check_branch
              %837 = sbr.rel (0) target = $region44
            $region43: #{model_forward.1} parent=39 // pred_region
              // Predicated region
              $region63: #{model_forward.1} parent=43 // pred_check
                _
              $region64: #{model_forward.1} parent=43 // pred_check_branch
                %891 = sbr.rel (0) target = $region66
              $region65: #{model_forward.1} parent=43 // pred_region
                %s892 = sdiv.u32.pop %s828, 3
                %s893 = srem.u32.pop %s828, 3
                // While loop
                $region67: #{model_forward.1} parent=65 // loop_pre_header
                  _
                $region68: #{model_forward.1} parent=65 // loop_header
                  %s895 = sphi 0, %s897
                  %p896 = scmp.ge.s32.totalorder %s895, %s892
                  %s900 = sphi 0, %s911
                  %s901 = sphi %s821, %s914
                  %s902 = sphi %s832, %s915
                $region69: #{model_forward.1} parent=65 // loop_header_branch
                  %899 = sbr.rel (%p896) target = $region73
                $region70: #{model_forward.1} parent=65 // loop_body
                  %v903 = vld [vmem:[%s901] sm:$0xff]
                  %904 = vst [vmem:[%s902] sm:$0xff] %v903
                  %v905 = vld [vmem:[%s901 + $0x8] sm:$0xff]
                  %906 = vst [vmem:[%s902 + $0x8] sm:$0xff] %v905
                  %v907 = vld [vmem:[%s901 + $0x10] sm:$0xff]
                  %908 = vst [vmem:[%s902 + $0x10] sm:$0xff] %v907
                  %s909 = sadd.s32 1, %s900
                  %p910 = scmp.ge.s32.totalorder %s909, %s892
                  %s911 = scalar_select %p910, 0, %s909
                  %s912 = smul.u32 %s911, 24
                  %s913 = smul.u32 %s911, 24
                  %s914 = scalar_lea.vmem %s821, %s912 [#allocation2]
                  %s915 = scalar_lea.vmem %s832, %s913
                $region71: #{model_forward.1} parent=65 // loop_footer
                  %s897 = sadd.s32 %s895, 1
                $region72: #{model_forward.1} parent=65 // loop_footer_branch
                  %894 = sbr.rel target = $region68
                $region73: #{model_forward.1} parent=65 // loop_exit
                  _
                %s916 = sdiv.u32.pop %s828, 3
                %s917 = srem.u32.pop %s828, 3
                %s918 = smul.u32 %s916, 3
                %s919 = smul.u32 8, %s918
                %s920 = scalar_lea.vmem %s821, %s919 [#allocation2]
                %s921 = smul.u32 8, %s918
                %s922 = scalar_lea.vmem %s832, %s921
                // While loop
                $region74: #{model_forward.1} parent=65 // loop_pre_header
                  _
                $region75: #{model_forward.1} parent=65 // loop_header
                  %s924 = sphi 0, %s926
                  %p925 = scmp.ge.s32.totalorder %s924, %s917
                  %s929 = sphi 0, %s936
                  %s930 = sphi %s920, %s939
                  %s931 = sphi %s922, %s940
                $region76: #{model_forward.1} parent=65 // loop_header_branch
                  %928 = sbr.rel (%p925) target = $region80
                $region77: #{model_forward.1} parent=65 // loop_body
                  %v932 = vld [vmem:[%s930] sm:$0xff]
                  %933 = vst [vmem:[%s931] sm:$0xff] %v932
                  %s934 = sadd.s32 1, %s929
                  %p935 = scmp.ge.s32.totalorder %s934, %s917
                  %s936 = scalar_select %p935, 0, %s934
                  %s937 = smul.u32 %s936, 8
                  %s938 = smul.u32 %s936, 8
                  %s939 = scalar_lea.vmem %s920, %s937 [#allocation2]
                  %s940 = scalar_lea.vmem %s922, %s938
                $region78: #{model_forward.1} parent=65 // loop_footer
                  %s926 = sadd.s32 %s924, 1
                $region79: #{model_forward.1} parent=65 // loop_footer_branch
                  %923 = sbr.rel target = $region75
                $region80: #{model_forward.1} parent=65 // loop_exit
                  _
              $region66: #{model_forward.1} parent=43 // pred_fallthru
                _
              // Predicated region
              $region81: #{model_forward.1} parent=43 // pred_check
                _
              $region82: #{model_forward.1} parent=43 // pred_check_branch
                %942 = sbr.rel target = $region84
              $region83: #{model_forward.1} parent=43 // pred_region
                _
              $region84: #{model_forward.1} parent=43 // pred_fallthru
                _
            $region44: #{model_forward.1} parent=39 // pred_fallthru
              _
            // Predicated region
            $region45: #{model_forward.1} parent=39 // pred_check
              _
            $region46: #{model_forward.1} parent=39 // pred_check_branch
              %839 = sbr.rel target = $region48
            $region47: #{model_forward.1} parent=39 // pred_region
              %s841 = sdiv.u32.pop %s828, 3
              %s842 = srem.u32.pop %s828, 3
              // While loop
              $region49: #{model_forward.1} parent=47 // loop_pre_header
                _
              $region50: #{model_forward.1} parent=47 // loop_header
                %s844 = sphi 0, %s846
                %p845 = scmp.ge.s32.totalorder %s844, %s841
                %s849 = sphi 0, %s860
                %s850 = sphi %s821, %s863
                %s851 = sphi %s832, %s864
              $region51: #{model_forward.1} parent=47 // loop_header_branch
                %848 = sbr.rel (%p845) target = $region55
              $region52: #{model_forward.1} parent=47 // loop_body
                %v852 = vld [vmem:[%s850] sm:$0xff]
                %853 = vst [vmem:[%s851] sm:$0xff] %v852
                %v854 = vld [vmem:[%s850 + $0x8] sm:$0xff]
                %855 = vst [vmem:[%s851 + $0x8] sm:$0xff] %v854
                %v856 = vld [vmem:[%s850 + $0x10] sm:$0xff]
                %857 = vst [vmem:[%s851 + $0x10] sm:$0xff] %v856
                %s858 = sadd.s32 1, %s849
                %p859 = scmp.ge.s32.totalorder %s858, %s841
                %s860 = scalar_select %p859, 0, %s858
                %s861 = smul.u32 %s860, 24
                %s862 = smul.u32 %s860, 24
                %s863 = scalar_lea.vmem %s821, %s861 [#allocation2]
                %s864 = scalar_lea.vmem %s832, %s862
              $region53: #{model_forward.1} parent=47 // loop_footer
                %s846 = sadd.s32 %s844, 1
              $region54: #{model_forward.1} parent=47 // loop_footer_branch
                %843 = sbr.rel target = $region50
              $region55: #{model_forward.1} parent=47 // loop_exit
                _
              %s865 = sdiv.u32.pop %s828, 3
              %s866 = srem.u32.pop %s828, 3
              %s867 = smul.u32 %s865, 3
              %s868 = smul.u32 8, %s867
              %s869 = scalar_lea.vmem %s821, %s868 [#allocation2]
              %s870 = smul.u32 8, %s867
              %s871 = scalar_lea.vmem %s832, %s870
              // While loop
              $region56: #{model_forward.1} parent=47 // loop_pre_header
                _
              $region57: #{model_forward.1} parent=47 // loop_header
                %s873 = sphi 0, %s875
                %p874 = scmp.ge.s32.totalorder %s873, %s866
                %s878 = sphi 0, %s885
                %s879 = sphi %s869, %s888
                %s880 = sphi %s871, %s889
              $region58: #{model_forward.1} parent=47 // loop_header_branch
                %877 = sbr.rel (%p874) target = $region62
              $region59: #{model_forward.1} parent=47 // loop_body
                %v881 = vld [vmem:[%s879] sm:$0xff]
                %882 = vst [vmem:[%s880] sm:$0xff] %v881
                %s883 = sadd.s32 1, %s878
                %p884 = scmp.ge.s32.totalorder %s883, %s866
                %s885 = scalar_select %p884, 0, %s883
                %s886 = smul.u32 %s885, 8
                %s887 = smul.u32 %s885, 8
                %s888 = scalar_lea.vmem %s869, %s886 [#allocation2]
                %s889 = scalar_lea.vmem %s871, %s887
              $region60: #{model_forward.1} parent=47 // loop_footer
                %s875 = sadd.s32 %s873, 1
              $region61: #{model_forward.1} parent=47 // loop_footer_branch
                %872 = sbr.rel target = $region57
              $region62: #{model_forward.1} parent=47 // loop_exit
                _
            $region48: #{model_forward.1} parent=39 // pred_fallthru
              _
          $region40: #{model_forward.1} parent=35 // pred_fallthru
            _
          %943 = vnop
        $region36: #{model_forward.1} parent=31 // pred_fallthru
          _
      $region32: #{model_forward.1} parent=5 // pred_fallthru
        _
      %p944 = scmp.le.s32.totalorder 2, %s9
      // Predicated region
      $region85: #{model_forward.1} parent=5 // pred_check
        %p945 = pneg %p944
      $region86: #{model_forward.1} parent=5 // pred_check_branch
        %947 = sbr.rel (%p945) target = $region88
      $region87: #{model_forward.1} parent=5 // pred_region
        %s948 = ssub.s32 %s9, 2
        // Predicated region
        $region89: #{model_forward.1} parent=87 // pred_check
          %p949 = pneg %p106
        $region90: #{model_forward.1} parent=87 // pred_check_branch
          %951 = sbr.rel (%p949) target = $region92
        $region91: #{model_forward.1} parent=87 // pred_region
          %s952 = sand.u32 %s91, 1
          %s953 = sand.u32 %s91, 1
          %s954 = smul.addr %s953, 24
          %s955 = scalar_lea.vmem [#allocation2], %s954
        $region92: #{model_forward.1} parent=87 // pred_fallthru
          _
      $region88: #{model_forward.1} parent=5 // pred_fallthru
        _
    $region6: #{model_forward.1} parent=1 // loop_footer
      %s13 = sadd.s32 1, %s9
    $region7: #{model_forward.1} parent=1 // loop_footer_branch
      %8 = sbr.rel target = $region3
    $region8: #{model_forward.1} parent=1 // loop_exit
      _

</llo_original>
